<compile_context>
chip_gen: v5e
topology: v5e:2x2
jax: 0.10.0
libtpu: 0.0.40
codegen_flags: <defaults>
</compile_context>

<pallas_src>
import functools
import math

import jax
import jax.numpy as jnp
from jax.experimental import pallas as pl
from jax.experimental.pallas import tpu as pltpu

INF = 1.0e10                               # sentinel value of the PyTorch module
_NEG_FILL = float(jnp.finfo(jnp.float32).min)
_LANE = 128


def _proxy_anchor_kernel(row_ref, sim_ref, col_ref, out_ref, *, a, b):
    """Per-column (proxy) partials for one class tile.

    out_ref (3, T): row 0 = h_pos (column logsumexp over positive entries),
                    row 1 = has_pos (1.0 / 0.0),
                    row 2 = h_neg (column logsumexp over negative entries).
    """
    sim = sim_ref[...].astype(jnp.float32)           # (B, T), bf16 -> f32 here
    row_labels = row_ref[...]                        # (B, 1) i32 (resident)
    col_labels = col_ref[...]                        # (1, T) i32

    pos_mask = row_labels == col_labels              # (B, T) broadcasted compare
    t = a * sim                                      # shared by both terms
    ab = a * b
    batch = sim.shape[0]

    # ---- positive term: column logsumexp of -a*(sim - b) = ab - t over the
    #      positive entries.  Masked entries get _NEG_FILL; exp(_NEG_FILL - m)
    #      underflows to exactly 0, so the same masked matrix feeds both the
    #      max and the exp-sum (no second where around the exp). -------------
    xp = jnp.where(pos_mask, ab - t, _NEG_FILL)
    has_pos = jnp.any(pos_mask, axis=0, keepdims=True)                  # (1, T)
    mp = jnp.where(has_pos, jnp.max(xp, axis=0, keepdims=True), 0.0)
    sp = jnp.sum(jnp.exp(xp - mp), axis=0, keepdims=True)
    h_pos = jnp.where(has_pos, jnp.log(sp) + mp, 0.0)                   # (1, T)

    # ---- negative term: column logsumexp of a*(sim + b) = t + ab over the
    #      negative entries (pos_mask selects the sentinel branch directly; no
    #      full (B, T) logical_not is materialized). -------------------------
    xn = jnp.where(pos_mask, _NEG_FILL, t + ab)
    has_neg = jnp.logical_not(jnp.all(pos_mask, axis=0, keepdims=True))
    mn = jnp.where(has_neg, jnp.max(xn, axis=0, keepdims=True), 0.0)
    sn = jnp.sum(jnp.exp(xn - mn), axis=0, keepdims=True)
    # Columns with no negatives (every sample carries that label) reproduce the
    # PyTorch -INF sentinel: logsumexp of `batch` copies of a*(-INF + b).
    empty_neg = a * (-INF + b) + math.log(batch)
    h_neg = jnp.where(has_neg, jnp.log(sn) + mn, empty_neg)             # (1, T)

    out_ref[...] = jnp.concatenate(
        [h_pos, has_pos.astype(jnp.float32), h_neg], axis=0)            # (3, T)


def _choose_tile(batch, num_cls, itemsize, tile_c):
    """Pick the class-tile width (multiple of 128 lanes) and number of tiles."""
    if num_cls <= _LANE:
        return num_cls, 1                            # single full-extent block
    if tile_c is None:
        # VMEM per column ~= double-buffered sim rows + ~10 full-tile f32
        # temporaries the compiler keeps live; stay well under v7x's 64 MiB.
        bytes_per_col = batch * (2 * itemsize + 10 * 4)
        budget_cols = max(_LANE, (40 * 1024 * 1024) // max(bytes_per_col, 1))
        # >= ~2 MiB sim blocks amortize the per-grid-step overhead.
        target_cols = max(_LANE, (2 * 1024 * 1024) // max(batch * itemsize, 1))
        tile_c = min(target_cols, budget_cols, 4096)
    # Keep at least two class tiles so dimension_semantics=("parallel",) can
    # shard the grid across both v7x TensorCores.
    half = ((pl.cdiv(num_cls, 2) + _LANE - 1) // _LANE) * _LANE
    tile = max(_LANE, min(int(tile_c), half))
    tile = (tile // _LANE) * _LANE
    return tile, pl.cdiv(num_cls, tile)


def proxy_anchor_loss(similarity_matrix, row_labels, col_labels,
                      *, a=32.0, b=0.1, tile_c=None):
    """similarity_matrix: (batch, num_cls) f32 or bf16 (f32 accumulation is
    done in-kernel); row_labels: (batch,) int; col_labels: (num_cls,) int."""
    batch, num_cls = similarity_matrix.shape
    rl = row_labels.astype(jnp.int32).reshape(batch, 1)
    cl = col_labels.astype(jnp.int32).reshape(1, num_cls)
    itemsize = jnp.dtype(similarity_matrix.dtype).itemsize

    tile, num_tiles = _choose_tile(batch, num_cls, itemsize, tile_c)
    # TODO(synk): for very large batch sizes, strip-mine the batch axis inside
    # the kernel (fori_loop carrying running max / sum) instead of flooring the
    # class tile at 128 lanes.

    kernel = functools.partial(_proxy_anchor_kernel, a=float(a), b=float(b))

    cost = pl.CostEstimate(
        flops=16 * batch * num_cls,
        transcendentals=2 * batch * num_cls + 4 * num_cls,
        bytes_accessed=batch * num_cls * itemsize
                       + 4 * (batch + num_cls) + 3 * num_cls * 4,
    )

    partials = pl.pallas_call(
        kernel,
        out_shape=jax.ShapeDtypeStruct((3, num_cls), jnp.float32),
        grid=(num_tiles,),
        in_specs=[
            pl.BlockSpec((batch, 1), lambda j: (0, 0)),      # row labels (resident)
            pl.BlockSpec((batch, tile), lambda j: (0, j)),   # sim class tile (ragged last tile ok)
            pl.BlockSpec((1, tile), lambda j: (0, j)),       # col labels tile
        ],
        out_specs=pl.BlockSpec((3, tile), lambda j: (0, j)),
        compiler_params=pltpu.CompilerParams(
            dimension_semantics=("parallel",),
            vmem_limit_bytes=48 * 1024 * 1024,
        ),
        cost_estimate=cost,
    )(rl, similarity_matrix, cl)

    h_pos = partials[0]
    has_pos_f = partials[1]
    h_neg = partials[2]
    has_pos = has_pos_f > 0.5

    # Matches the PyTorch module: divide by the number of proxies that have at
    # least one positive (NaN if there are none, same as the reference).
    num_pos_proxies = jnp.sum(has_pos_f)
    pos_loss = jnp.sum(jnp.where(has_pos, h_pos, 0.0)) / num_pos_proxies
    neg_loss = jnp.sum(h_neg) / batch
    return pos_loss + neg_loss


def _reference(similarity_matrix, row_labels, col_labels, a=32.0, b=0.1):
    """Pure-JAX reference mirroring the PyTorch forward (for validation)."""
    sim = similarity_matrix.astype(jnp.float32)
    batch, _ = sim.shape
    pos_mask = row_labels[:, None] == col_labels[None, :]
    pos_mat = jnp.where(pos_mask, sim, INF)
    h_pos = jax.scipy.special.logsumexp(-a * (pos_mat - b), axis=0)
    has_pos = jnp.any(pos_mask, axis=0)
    pos_loss = jnp.sum(jnp.where(has_pos, h_pos, 0.0)) / jnp.sum(has_pos)
    neg_mat = jnp.where(pos_mask, -INF, sim)
    h_neg = jax.scipy.special.logsumexp(a * (neg_mat + b), axis=0)
    neg_loss = jnp.sum(h_neg) / batch
    return pos_loss + neg_loss


if __name__ == "__main__":
    key = jax.random.PRNGKey(0)

    # --- case 1: single full-extent tile (C <= 128) ----------------------
    k_sim, k_lbl, key = jax.random.split(key, 3)
    sim1 = jax.random.uniform(k_sim, (8, 16), jnp.float32, -1.0, 1.0)
    rl1 = jax.random.randint(k_lbl, (8,), 0, 16, dtype=jnp.int32)
    cl1 = jnp.arange(16, dtype=jnp.int32)
    out1 = jax.block_until_ready(proxy_anchor_loss(sim1, rl1, cl1, a=32, b=0.1))
    ref1 = _reference(sim1, rl1, cl1, a=32.0, b=0.1)
    assert jnp.allclose(out1, ref1, rtol=1e-4, atol=1e-4), (out1, ref1)

    # --- case 2: multi-tile with ragged last tile (C=200 -> 128 + 72), no
    #     wrapper-side padding of the similarity matrix --------------------
    k_sim, k_lbl, key = jax.random.split(key, 3)
    sim2 = jax.random.uniform(k_sim, (8, 200), jnp.float32, -1.0, 1.0)
    rl2 = jax.random.randint(k_lbl, (8,), 0, 200, dtype=jnp.int32)
    cl2 = jnp.arange(200, dtype=jnp.int32)
    out2 = jax.block_until_ready(proxy_anchor_loss(sim2, rl2, cl2, a=32, b=0.1))
    ref2 = _reference(sim2, rl2, cl2, a=32.0, b=0.1)
    assert jnp.allclose(out2, ref2, rtol=1e-4, atol=1e-4), (out2, ref2)

    # --- case 3: bf16 similarity feed (upcast in-kernel), multi-tile -------
    k_sim, k_lbl = jax.random.split(key)
    sim3 = jax.random.uniform(k_sim, (8, 384), jnp.float32, -1.0, 1.0)
    sim3 = sim3.astype(jnp.bfloat16)
    rl3 = jax.random.randint(k_lbl, (8,), 0, 384, dtype=jnp.int32)
    cl3 = jnp.arange(384, dtype=jnp.int32)
    out3 = jax.block_until_ready(proxy_anchor_loss(sim3, rl3, cl3, a=32, b=0.1))
    ref3 = _reference(sim3.astype(jnp.float32), rl3, cl3, a=32.0, b=0.1)
    assert jnp.allclose(out3, ref3, rtol=1e-4, atol=1e-4), (out3, ref3)

    print("KERNEL_OK")
</pallas_src>

<mosaic_0001>
module attributes {stable_mosaic.version = 11 : i64} {
  func.func @_proxy_anchor_kernel(%arg0: i32, %arg1: memref<8x1xi32, #tpu.memory_space<vmem>>, %arg2: memref<8x16xf32, #tpu.memory_space<vmem>>, %arg3: memref<1x16xi32, #tpu.memory_space<vmem>>, %arg4: memref<3x16xf32, #tpu.memory_space<vmem>>) attributes {dimension_semantics = [#tpu.dimension_semantics<parallel>], iteration_bounds = array<i64: 1>, scalar_prefetch = 0 : i64, scratch_operands = 0 : i64, tpu.core_type = #tpu.core_type<tc>, window_params = [{pipeline_mode = #tpu.pipeline_mode<synchronous>, transform_indices = @transform_0, window_bounds = array<i64: 8, 1>}, {transform_indices = @transform_1, window_bounds = array<i64: 8, 16>}, {transform_indices = @transform_2, window_bounds = array<i64: 1, 16>}, {transform_indices = @transform_3, window_bounds = array<i64: 3, 16>}]} {
    %c0 = arith.constant 0 : index
    %c0_0 = arith.constant 0 : index
    %0 = vector.load %arg2[%c0, %c0_0] : memref<8x16xf32, #tpu.memory_space<vmem>>, vector<8x16xf32>
    %c0_1 = arith.constant 0 : index
    %c0_2 = arith.constant 0 : index
    %1 = vector.load %arg1[%c0_1, %c0_2] : memref<8x1xi32, #tpu.memory_space<vmem>>, vector<8x1xi32>
    %c0_3 = arith.constant 0 : index
    %c0_4 = arith.constant 0 : index
    %2 = vector.load %arg3[%c0_3, %c0_4] : memref<1x16xi32, #tpu.memory_space<vmem>>, vector<1x16xi32>
    %3 = vector.broadcast %1 : vector<8x1xi32> to vector<8x16xi32>
    %4 = vector.broadcast %2 : vector<1x16xi32> to vector<8x16xi32>
    %5 = arith.cmpi eq, %3, %4 : vector<8x16xi32>
    %cst = arith.constant 3.200000e+01 : f32
    %6 = vector.broadcast %cst : f32 to vector<8x16xf32>
    %7 = arith.mulf %6, %0 : vector<8x16xf32>
    %cst_5 = arith.constant 3.200000e+00 : f32
    %8 = vector.broadcast %cst_5 : f32 to vector<8x16xf32>
    %9 = arith.subf %8, %7 : vector<8x16xf32>
    %cst_6 = arith.constant -3.40282347E+38 : f32
    %10 = vector.broadcast %cst_6 : f32 to vector<8x16xf32>
    %11 = arith.select %5, %9, %10 : vector<8x16xi1>, vector<8x16xf32>
    %cst_7 = arith.constant 1.000000e+00 : f32
    %cst_8 = arith.constant 0.000000e+00 : f32
    %12 = vector.broadcast %cst_7 : f32 to vector<8x16xf32>
    %13 = vector.broadcast %cst_8 : f32 to vector<8x16xf32>
    %14 = arith.select %5, %12, %13 : vector<8x16xi1>, vector<8x16xf32>
    %cst_9 = arith.constant dense<0xFF800000> : vector<16xf32>
    %15 = vector.multi_reduction <maximumf>, %14, %cst_9 [0] : vector<8x16xf32> to vector<16xf32>
    %cst_10 = arith.constant 0.000000e+00 : f32
    %16 = vector.broadcast %cst_10 : f32 to vector<16xf32>
    %17 = arith.cmpf ogt, %15, %16 : vector<16xf32>
    %18 = vector.shape_cast %17 : vector<16xi1> to vector<1x16xi1>
    %cst_11 = arith.constant dense<0xFF800000> : vector<16xf32>
    %19 = vector.multi_reduction <maximumf>, %11, %cst_11 [0] : vector<8x16xf32> to vector<16xf32>
    %20 = vector.shape_cast %19 : vector<16xf32> to vector<1x16xf32>
    %cst_12 = arith.constant 0.000000e+00 : f32
    %21 = vector.broadcast %cst_12 : f32 to vector<1x16xf32>
    %22 = arith.select %18, %20, %21 : vector<1x16xi1>, vector<1x16xf32>
    %23 = vector.broadcast %22 : vector<1x16xf32> to vector<8x16xf32>
    %24 = arith.subf %11, %23 : vector<8x16xf32>
    %25 = math.exp %24 : vector<8x16xf32>
    %cst_13 = arith.constant dense<0.000000e+00> : vector<16xf32>
    %26 = vector.multi_reduction <add>, %25, %cst_13 [0] : vector<8x16xf32> to vector<16xf32>
    %27 = vector.shape_cast %26 : vector<16xf32> to vector<1x16xf32>
    %28 = math.log %27 : vector<1x16xf32>
    %29 = arith.addf %28, %22 : vector<1x16xf32>
    %cst_14 = arith.constant 0.000000e+00 : f32
    %30 = vector.broadcast %cst_14 : f32 to vector<1x16xf32>
    %31 = arith.select %18, %29, %30 : vector<1x16xi1>, vector<1x16xf32>
    %cst_15 = arith.constant 3.200000e+00 : f32
    %32 = vector.broadcast %cst_15 : f32 to vector<8x16xf32>
    %33 = arith.addf %7, %32 : vector<8x16xf32>
    %cst_16 = arith.constant -3.40282347E+38 : f32
    %34 = vector.broadcast %cst_16 : f32 to vector<8x16xf32>
    %35 = arith.select %5, %34, %33 : vector<8x16xi1>, vector<8x16xf32>
    %cst_17 = arith.constant 1.000000e+00 : f32
    %cst_18 = arith.constant 0.000000e+00 : f32
    %36 = vector.broadcast %cst_17 : f32 to vector<8x16xf32>
    %37 = vector.broadcast %cst_18 : f32 to vector<8x16xf32>
    %38 = arith.select %5, %36, %37 : vector<8x16xi1>, vector<8x16xf32>
    %cst_19 = arith.constant dense<0x7F800000> : vector<16xf32>
    %39 = vector.multi_reduction <minimumf>, %38, %cst_19 [0] : vector<8x16xf32> to vector<16xf32>
    %cst_20 = arith.constant 0.000000e+00 : f32
    %40 = vector.broadcast %cst_20 : f32 to vector<16xf32>
    %41 = arith.cmpf ogt, %39, %40 : vector<16xf32>
    %42 = vector.shape_cast %41 : vector<16xi1> to vector<1x16xi1>
    %cst_21 = arith.constant dense<true> : vector<1x16xi1>
    %43 = arith.xori %42, %cst_21 : vector<1x16xi1>
    %cst_22 = arith.constant dense<0xFF800000> : vector<16xf32>
    %44 = vector.multi_reduction <maximumf>, %35, %cst_22 [0] : vector<8x16xf32> to vector<16xf32>
    %45 = vector.shape_cast %44 : vector<16xf32> to vector<1x16xf32>
    %cst_23 = arith.constant 0.000000e+00 : f32
    %46 = vector.broadcast %cst_23 : f32 to vector<1x16xf32>
    %47 = arith.select %43, %45, %46 : vector<1x16xi1>, vector<1x16xf32>
    %48 = vector.broadcast %47 : vector<1x16xf32> to vector<8x16xf32>
    %49 = arith.subf %35, %48 : vector<8x16xf32>
    %50 = math.exp %49 : vector<8x16xf32>
    %cst_24 = arith.constant dense<0.000000e+00> : vector<16xf32>
    %51 = vector.multi_reduction <add>, %50, %cst_24 [0] : vector<8x16xf32> to vector<16xf32>
    %52 = vector.shape_cast %51 : vector<16xf32> to vector<1x16xf32>
    %53 = math.log %52 : vector<1x16xf32>
    %54 = arith.addf %53, %47 : vector<1x16xf32>
    %cst_25 = arith.constant -3.200000e+11 : f32
    %55 = vector.broadcast %cst_25 : f32 to vector<1x16xf32>
    %56 = arith.select %43, %54, %55 : vector<1x16xi1>, vector<1x16xf32>
    %57 = arith.extui %18 : vector<1x16xi1> to vector<1x16xi32>
    %58 = arith.sitofp %57 : vector<1x16xi32> to vector<1x16xf32>
    %59 = tpu.concatenate %31, %58, %56 in 0 : vector<1x16xf32>, vector<1x16xf32>, vector<1x16xf32> -> vector<3x16xf32>
    %c0_26 = arith.constant 0 : index
    %c0_27 = arith.constant 0 : index
    %60 = vector.load %arg4[%c0_26, %c0_27] : memref<3x16xf32, #tpu.memory_space<vmem>>, vector<3x16xf32>
    tpu.vector_store %arg4[%c0_26, %c0_27], %59 {strides = array<i32>} : memref<3x16xf32, #tpu.memory_space<vmem>>, vector<3x16xf32>,
    return
  }
  func.func @transform_0(%arg0: i32) -> (i32, i32) {
    %c0_i32 = arith.constant 0 : i32
    %c0_i32_0 = arith.constant 0 : i32
    %c0_i32_1 = arith.constant 0 : i32
    return %c0_i32, %c0_i32_0 : i32, i32
  }
  func.func @transform_1(%arg0: i32) -> (i32, i32) {
    %c0_i32 = arith.constant 0 : i32
    %c0_i32_0 = arith.constant 0 : i32
    return %c0_i32, %arg0 : i32, i32
  }
  func.func @transform_2(%arg0: i32) -> (i32, i32) {
    %c0_i32 = arith.constant 0 : i32
    %c0_i32_0 = arith.constant 0 : i32
    return %c0_i32, %arg0 : i32, i32
  }
  func.func @transform_3(%arg0: i32) -> (i32, i32) {
    %c0_i32 = arith.constant 0 : i32
    %c0_i32_0 = arith.constant 0 : i32
    return %c0_i32, %arg0 : i32, i32
  }
}

</mosaic_0001>

<llo_original>
// kernel: tpu_custom_call.1
$region0: #{tpu_custom_call.1}
  #allocation0 [shape = 'u32[]', space=smem, size = 0x4, offset = 0x4, fixed_abs, tag = 'smem constant byte address 0x4 - core index']
  #allocation1 [shape = 'u32[72,128]{1,0:T(1,128)}', space=vmem, size = 0x9000, scoped, tag = 'internal scratch']
  %s0 = inlined_call_operand.vmem [shape: s32[8,1], index: 0, kind: input, shape index: {}]
  %s1 = inlined_call_operand.vmem [shape: f32[8,16], index: 1, kind: input, shape index: {}]
  %s2 = inlined_call_operand.vmem [shape: s32[1,16], index: 2, kind: input, shape index: {}]
  %s3 = inlined_call_operand.hbm [shape: f32[3,16], index: 3, kind: output, shape index: {}]
  %s4 = sld [smem:[#allocation0]]
  $region22: #{tpu_custom_call.1} parent=0
    _
  %s6 = ssub.s32 1, %s4
  %s7 = scalar_select 0, %s6, %s4
  $region1: #{tpu_custom_call.1} parent=0
    #allocation2 [shape = 'u8[2048]{0}', space=vmem, size = 0x800, scoped, tag = 'output window, operand 0, single buffered']
    #allocation3 [shape = 's32[1]{0}', space=sflag, size = 0x4, scoped, tag = 'scoped memory for tpu_custom_call.1']
    %8 = vsyncpa [#allocation3], 0
    // Predicated region
    $region2: #{tpu_custom_call.1} parent=1 // pred_check
      _
    $region3: #{tpu_custom_call.1} parent=1 // pred_check_branch
      %10 = sbr.rel (0) target = $region5
    $region4: #{tpu_custom_call.1} parent=1 // pred_region
      _
    $region5: #{tpu_custom_call.1} parent=1 // pred_fallthru
      _
    // Predicated region
    $region6: #{tpu_custom_call.1} parent=1 // pred_check
      _
    $region7: #{tpu_custom_call.1} parent=1 // pred_check_branch
      %12 = sbr.rel (0) target = $region9
    $region8: #{tpu_custom_call.1} parent=1 // pred_region
      _
    $region9: #{tpu_custom_call.1} parent=1 // pred_fallthru
      _
    // Predicated region
    $region10: #{tpu_custom_call.1} parent=1 // pred_check
      _
    $region11: #{tpu_custom_call.1} parent=1 // pred_check_branch
      %14 = sbr.rel (0) target = $region13
    $region12: #{tpu_custom_call.1} parent=1 // pred_region
      _
    $region13: #{tpu_custom_call.1} parent=1 // pred_fallthru
      _
    %v15 = vld [vmem:[%s1] sm:$0xff]
    %v16 = vld [vmem:[%s0] sm:$0xff]
    %v17 = vld [vmem:[%s2] sm:$0x1]
    %18 = vset.pattern.permute.xlu0 0
    %19 = vperm.xlu0 %18, %v16
    %v20 = vpop.permute.xlu0 %19
    %v21 = vperm.slane %v17, 0
    %vm22 = vcmp.eq.s32.totalorder %v20, %v21
    %v23 = vmul.f32 %v15, 32.0
    %v24 = vsub.f32 3.2, %v23
    %v25 = vsel %vm22, %v24, -3.4028235e+38
    %v26 = vsel %vm22, 1.0, 0.0
    %vm27 = vcmask 130048
    %v28 = vsel %vm27, %v26, -inf
    %v29 = vrot.slane %v28, 4
    %v30 = vmax.f32 %v28, %v29
    %v31 = vrot.slane %v30, 2
    %v32 = vmax.f32 %v30, %v31
    %v33 = vrot.slane %v32, 1
    %v34 = vmax.f32 %v32, %v33
    %vm35 = vcmp.gt.f32.partialorder %v34, 0.0
    %v36 = vsel %vm27, %v25, -inf
    %v37 = vrot.slane %v36, 4
    %v38 = vmax.f32 %v36, %v37
    %v39 = vrot.slane %v38, 2
    %v40 = vmax.f32 %v38, %v39
    %v41 = vrot.slane %v40, 1
    %v42 = vmax.f32 %v40, %v41
    %v43 = vsel %vm35, %v42, 0.0
    %v44 = vsub.f32 %v25, %v43
    %v45 = vmul.f32 %v44, 1.442695
    %v46 = vpow.pop %v45
    %v47 = vsel %vm27, %v46, 0.0
    %v48 = vrot.slane %v47, 4
    %v49 = vadd.f32 %v47, %v48
    %v50 = vrot.slane %v49, 2
    %v51 = vadd.f32 %v49, %v50
    %v52 = vrot.slane %v51, 1
    %v53 = vadd.f32 %v51, %v52
    %v54 = vlog2.pop %v53
    %v55 = vmul.f32 %v54, 0.6931472
    %v56 = vadd.f32 %v55, %v43
    %v57 = vsel %vm35, %v56, 0.0
    %v58 = vadd.f32 %v23, 3.2
    %v59 = vsel %vm22, -3.4028235e+38, %v58
    %v60 = vsel %vm27, %v26, inf
    %v61 = vrot.slane %v60, 4
    %v62 = vmin.f32 %v60, %v61
    %v63 = vrot.slane %v62, 2
    %v64 = vmin.f32 %v62, %v63
    %v65 = vrot.slane %v64, 1
    %v66 = vmin.f32 %v64, %v65
    %vm67 = vcmp.gt.f32.partialorder %v66, 0.0
    %vm68 = vmxor %vm67, 1
    %v69 = vsel %vm27, %v59, -inf
    %v70 = vrot.slane %v69, 4
    %v71 = vmax.f32 %v69, %v70
    %v72 = vrot.slane %v71, 2
    %v73 = vmax.f32 %v71, %v72
    %v74 = vrot.slane %v73, 1
    %v75 = vmax.f32 %v73, %v74
    %v76 = vsel %vm68, %v75, 0.0
    %v77 = vsub.f32 %v59, %v76
    %v78 = vmul.f32 %v77, 1.442695
    %v79 = vpow.pop %v78
    %v80 = vsel %vm27, %v79, 0.0
    %v81 = vrot.slane %v80, 4
    %v82 = vadd.f32 %v80, %v81
    %v83 = vrot.slane %v82, 2
    %v84 = vadd.f32 %v82, %v83
    %v85 = vrot.slane %v84, 1
    %v86 = vadd.f32 %v84, %v85
    %v87 = vlog2.pop %v86
    %v88 = vmul.f32 %v87, 0.6931472
    %v89 = vadd.f32 %v88, %v76
    %v90 = vsel %vm68, %v89, -3.2e+11
    %v91 = vsel %vm35, 1, 0
    %v92 = vcvt.s32.f32 %v91
    %vm93 = vcmask 1040384
    %v94 = vsel %vm93, %v57, %v92
    %vm95 = vcmask 1041408
    %v96 = vsel %vm95, %v94, %v90
    %vm97 = vcmask 124928
    %98 = vst.msk [vmem:[#allocation2] sm:$0x7] %vm97, %v96
    // Predicated region
    $region14: #{tpu_custom_call.1} parent=1 // pred_check
      _
    $region15: #{tpu_custom_call.1} parent=1 // pred_check_branch
      %100 = sbr.rel (0) target = $region17
    $region16: #{tpu_custom_call.1} parent=1 // pred_region
      %102 = vsyncadd [#allocation3], 0
      %s104 = sshll.u32 [#allocation2], 4
      %s105 = int_to_ptr.vmem [resolvable:$true] %s104
      %s106 = sshll.u32 %s3, 4
      %s107 = int_to_ptr.hbm [resolvable:$true] %s106
      %109 = dma.vmem_to_hbm [thread:$0]  %s105, 64, %s107, [#allocation3]
    $region17: #{tpu_custom_call.1} parent=1 // pred_fallthru
      _
    // Predicated region
    $region18: #{tpu_custom_call.1} parent=1 // pred_check
      _
    $region19: #{tpu_custom_call.1} parent=1 // pred_check_branch
      %111 = sbr.rel (0) target = $region21
    $region20: #{tpu_custom_call.1} parent=1 // pred_region
      %113 = dma.done [#allocation3], 64
    $region21: #{tpu_custom_call.1} parent=1 // pred_fallthru
      _
    %114 = vsyncpa [#allocation3], 1

</llo_original>
